<compile_context>
chip_gen: v7x
topology: tpu7x:2x2x1
jax: 0.10.0
libtpu: 0.0.40
codegen_flags: <defaults>
</compile_context>

<pallas_src>
import functools

import jax
import jax.numpy as jnp
from jax.experimental import pallas as pl
from jax.experimental.pallas import tpu as pltpu

LANE = 128          # vreg lane width
SUBLANE_BF16 = 16   # bf16 sublane packing (min row tile for a bf16 block)


def _round_up(n, m):
    return ((n + m - 1) // m) * m


def _cdiv(a, b):
    return -(-a // b)


def mlp_q_net_kernel(x_ref, w1_ref, b1_ref, w2_ref, b2_ref, o_ref):
    """One batch tile: relu(x @ W1 + b1) @ W2 + b2, narrow (n_actions-wide) store."""
    n_actions = o_ref.shape[-1]
    # bf16 operands -> MXU at native rate; accumulate in f32.
    h = jnp.dot(x_ref[...], w1_ref[...], preferred_element_type=jnp.float32) + b1_ref[...]
    h = jnp.maximum(h, 0.0)                                   # ReLU (f32, VPU)
    o = jnp.dot(h.astype(jnp.bfloat16), w2_ref[...],
                preferred_element_type=jnp.float32) + b2_ref[...]
    # Lane-dense compute on the padded width, narrow store of the real action columns.
    o_ref[...] = o[:, :n_actions]


def pad_params(w1, b1, w2, b2):
    """Zero-pad hidden/action dims to lane width (128) and cast weights to bf16.

    Zero padding is exact: padded hidden units are relu(0 + 0) = 0 and padded W2
    rows contribute 0; padded action columns are never stored.
    """
    obs, hidden = w1.shape
    n_actions = w2.shape[1]
    h_pad = _round_up(hidden, LANE)
    a_pad = _round_up(n_actions, LANE)

    w1p = jnp.zeros((obs, h_pad), jnp.bfloat16).at[:, :hidden].set(w1.astype(jnp.bfloat16))
    b1p = jnp.zeros((1, h_pad), jnp.float32).at[:, :hidden].set(
        b1.reshape(1, -1).astype(jnp.float32))
    w2p = jnp.zeros((h_pad, a_pad), jnp.bfloat16).at[:hidden, :n_actions].set(
        w2.astype(jnp.bfloat16))
    b2p = jnp.zeros((1, a_pad), jnp.float32).at[:, :n_actions].set(
        b2.reshape(1, -1).astype(jnp.float32))
    return w1p, b1p, w2p, b2p, n_actions


def _choose_tb(batch, block_batch):
    """Pick the batch tile: minimal padding, <= block_batch rows/step, >=2 steps when
    there's enough work (so v7x's second TensorCore isn't idle)."""
    b16 = _round_up(batch, SUBLANE_BF16)
    if b16 <= block_batch:
        # Whole batch fits one step.  Split into 2 only when each half still has
        # meaningful work (>=128 rows per TC); costs nothing on single-TC v5e/v6e.
        n_steps = 2 if b16 >= 256 else 1
    else:
        n_steps = _cdiv(b16, block_batch)
    return _round_up(_cdiv(b16, n_steps), SUBLANE_BF16)


@functools.partial(jax.jit, static_argnames=("n_actions", "block_batch"))
def mlp_q_net_forward(x, w1p, b1p, w2p, b2p, *, n_actions, block_batch=4096):
    """Fused forward pass. x: (batch, obs), any float dtype; padded params from
    `pad_params`. Returns (batch, n_actions) f32."""
    batch, obs = x.shape
    h_pad = w1p.shape[1]
    a_pad = w2p.shape[1]

    # The module does x.float(); the MXU operand is bf16 either way, so cast to bf16
    # once here (halves x HBM read + VMEM footprint vs. shipping f32).
    x = x.astype(jnp.bfloat16)

    tb = _choose_tb(batch, block_batch)
    b_pad = _round_up(batch, tb)
    if b_pad != batch:
        x = jnp.pad(x, ((0, b_pad - batch), (0, 0)))

    out = pl.pallas_call(
        mlp_q_net_kernel,
        out_shape=jax.ShapeDtypeStruct((b_pad, n_actions), jnp.float32),
        grid_spec=pl.GridSpec(
            grid=(b_pad // tb,),
            in_specs=[
                pl.BlockSpec((tb, obs), lambda i: (i, 0)),       # pipelined bf16 x tile
                pl.BlockSpec((obs, h_pad), lambda i: (0, 0)),    # W1: VMEM-resident
                pl.BlockSpec((1, h_pad), lambda i: (0, 0)),      # b1: VMEM-resident
                pl.BlockSpec((h_pad, a_pad), lambda i: (0, 0)),  # W2: VMEM-resident
                pl.BlockSpec((1, a_pad), lambda i: (0, 0)),      # b2: VMEM-resident
            ],
            # Narrow (n_actions-wide) output: last dim equals the full array dim, so the
            # (8,128) rule is satisfied and the 128-wide padded writeback disappears.
            out_specs=pl.BlockSpec((tb, n_actions), lambda i: (i, 0)),
        ),
        compiler_params=pltpu.CompilerParams(
            dimension_semantics=("parallel",),  # shard batch across v7x's 2 TensorCores
        ),
    )(x, w1p, b1p, w2p, b2p)

    return out[:batch] if b_pad != batch else out


def init_params(key, obs_size, hidden_size, n_actions):
    """Deterministic init mimicking nn.Linear default (uniform +/- 1/sqrt(fan_in))."""
    k1, k2, k3, k4 = jax.random.split(key, 4)
    bound1 = 1.0 / jnp.sqrt(obs_size)
    bound2 = 1.0 / jnp.sqrt(hidden_size)
    w1 = jax.random.uniform(k1, (obs_size, hidden_size), jnp.float32, -bound1, bound1)
    b1 = jax.random.uniform(k2, (1, hidden_size), jnp.float32, -bound1, bound1)
    w2 = jax.random.uniform(k3, (hidden_size, n_actions), jnp.float32, -bound2, bound2)
    b2 = jax.random.uniform(k4, (1, n_actions), jnp.float32, -bound2, bound2)
    return w1, b1, w2, b2


if __name__ == "__main__":
    key = jax.random.PRNGKey(0)
    batch, obs_size, hidden_size, n_actions = 8, 16, 32, 4

    kx, kx2, kx3, kp = jax.random.split(key, 4)
    x = jax.random.normal(kx, (batch, obs_size), jnp.float32)
    w1, b1, w2, b2 = init_params(kp, obs_size, hidden_size, n_actions)

    # Pad/cast weights once (outside the hot path).
    w1p, b1p, w2p, b2p, na = pad_params(w1, b1, w2, b2)

    # f32 reference (module semantics).
    def ref_fn(xv):
        return jnp.maximum(xv @ w1 + b1, 0.0) @ w2 + b2

    # bf16 MXU operands with f32 accumulation -> slightly looser tolerance than pure f32.
    TOL = dict(atol=5e-2, rtol=5e-2)

    # 1) Small batch, single grid step (batch padded 8 -> 16 rows).
    out = mlp_q_net_forward(x, w1p, b1p, w2p, b2p, n_actions=na)
    out = jax.block_until_ready(out)
    assert out.shape == (batch, n_actions)
    assert jnp.allclose(out, ref_fn(x), **TOL)

    # 2) Ragged batch with a multi-step pipelined grid (block_batch=16 -> 3 grid steps).
    x2 = jax.random.normal(kx2, (37, obs_size), jnp.float32)
    out2 = mlp_q_net_forward(x2, w1p, b1p, w2p, b2p, n_actions=na, block_batch=16)
    out2 = jax.block_until_ready(out2)
    assert out2.shape == (37, n_actions)
    assert jnp.allclose(out2, ref_fn(x2), **TOL)

    # 3) Medium batch with the default tiling -> exactly 2 steps (v7x dual-TC path).
    x3 = jax.random.normal(kx3, (300, obs_size), jnp.float32)
    out3 = mlp_q_net_forward(x3, w1p, b1p, w2p, b2p, n_actions=na)
    out3 = jax.block_until_ready(out3)
    assert out3.shape == (300, n_actions)
    assert jnp.allclose(out3, ref_fn(x3), **TOL)

    print("KERNEL_OK")
</pallas_src>

<mosaic_0001>
module attributes {stable_mosaic.version = 11 : i64} {
  func.func @mlp_q_net_kernel(%arg0: i32, %arg1: memref<16x16xbf16, #tpu.memory_space<vmem>>, %arg2: memref<16x128xbf16, #tpu.memory_space<vmem>>, %arg3: memref<1x128xf32, #tpu.memory_space<vmem>>, %arg4: memref<128x128xbf16, #tpu.memory_space<vmem>>, %arg5: memref<1x128xf32, #tpu.memory_space<vmem>>, %arg6: memref<16x4xf32, #tpu.memory_space<vmem>>) attributes {dimension_semantics = [#tpu.dimension_semantics<parallel>], iteration_bounds = array<i64: 1>, scalar_prefetch = 0 : i64, scratch_operands = 0 : i64, tpu.core_type = #tpu.core_type<tc>, window_params = [{transform_indices = @transform_0, window_bounds = array<i64: 16, 16>}, {pipeline_mode = #tpu.pipeline_mode<synchronous>, transform_indices = @transform_1, window_bounds = array<i64: 16, 128>}, {pipeline_mode = #tpu.pipeline_mode<synchronous>, transform_indices = @transform_2, window_bounds = array<i64: 1, 128>}, {pipeline_mode = #tpu.pipeline_mode<synchronous>, transform_indices = @transform_3, window_bounds = array<i64: 128, 128>}, {pipeline_mode = #tpu.pipeline_mode<synchronous>, transform_indices = @transform_4, window_bounds = array<i64: 1, 128>}, {transform_indices = @transform_5, window_bounds = array<i64: 16, 4>}]} {
    %c0 = arith.constant 0 : index
    %c0_0 = arith.constant 0 : index
    %0 = vector.load %arg1[%c0, %c0_0] : memref<16x16xbf16, #tpu.memory_space<vmem>>, vector<16x16xbf16>
    %c0_1 = arith.constant 0 : index
    %c0_2 = arith.constant 0 : index
    %1 = vector.load %arg2[%c0_1, %c0_2] : memref<16x128xbf16, #tpu.memory_space<vmem>>, vector<16x128xbf16>
    %cst = arith.constant dense<0.000000e+00> : vector<16x128xf32>
    %2 = tpu.matmul %0, %1, %cst {dimension_numbers = #tpu.dot_dimension_numbers<[1], [0], [0], [1], [0, 0, 1, 1], [], []>} : vector<16x16xbf16>, vector<16x128xbf16>, vector<16x128xf32> -> vector<16x128xf32>
    %c0_3 = arith.constant 0 : index
    %c0_4 = arith.constant 0 : index
    %3 = vector.load %arg3[%c0_3, %c0_4] : memref<1x128xf32, #tpu.memory_space<vmem>>, vector<1x128xf32>
    %4 = vector.broadcast %3 : vector<1x128xf32> to vector<16x128xf32>
    %5 = arith.addf %2, %4 : vector<16x128xf32>
    %cst_5 = arith.constant 0.000000e+00 : f32
    %6 = vector.broadcast %cst_5 : f32 to vector<16x128xf32>
    %7 = arith.maximumf %5, %6 : vector<16x128xf32>
    %8 = arith.truncf %7 : vector<16x128xf32> to vector<16x128xbf16>
    %c0_6 = arith.constant 0 : index
    %c0_7 = arith.constant 0 : index
    %9 = vector.load %arg4[%c0_6, %c0_7] : memref<128x128xbf16, #tpu.memory_space<vmem>>, vector<128x128xbf16>
    %cst_8 = arith.constant dense<0.000000e+00> : vector<16x128xf32>
    %10 = tpu.matmul %8, %9, %cst_8 {dimension_numbers = #tpu.dot_dimension_numbers<[1], [0], [0], [1], [0, 0, 1, 1], [], []>} : vector<16x128xbf16>, vector<128x128xbf16>, vector<16x128xf32> -> vector<16x128xf32>
    %c0_9 = arith.constant 0 : index
    %c0_10 = arith.constant 0 : index
    %11 = vector.load %arg5[%c0_9, %c0_10] : memref<1x128xf32, #tpu.memory_space<vmem>>, vector<1x128xf32>
    %12 = vector.broadcast %11 : vector<1x128xf32> to vector<16x128xf32>
    %13 = arith.addf %10, %12 : vector<16x128xf32>
    %14 = vector.extract_strided_slice %13 {offsets = [0, 0], sizes = [16, 4], strides = [1, 1]} : vector<16x128xf32> to vector<16x4xf32>
    %c0_11 = arith.constant 0 : index
    %c0_12 = arith.constant 0 : index
    %15 = vector.load %arg6[%c0_11, %c0_12] : memref<16x4xf32, #tpu.memory_space<vmem>>, vector<16x4xf32>
    tpu.vector_store %arg6[%c0_11, %c0_12], %14 {strides = array<i32>} : memref<16x4xf32, #tpu.memory_space<vmem>>, vector<16x4xf32>,
    return
  }
  func.func @transform_0(%arg0: i32) -> (i32, i32) {
    %c0_i32 = arith.constant 0 : i32
    %c0_i32_0 = arith.constant 0 : i32
    return %arg0, %c0_i32 : i32, i32
  }
  func.func @transform_1(%arg0: i32) -> (i32, i32) {
    %c0_i32 = arith.constant 0 : i32
    %c0_i32_0 = arith.constant 0 : i32
    %c0_i32_1 = arith.constant 0 : i32
    return %c0_i32, %c0_i32_0 : i32, i32
  }
  func.func @transform_2(%arg0: i32) -> (i32, i32) {
    %c0_i32 = arith.constant 0 : i32
    %c0_i32_0 = arith.constant 0 : i32
    %c0_i32_1 = arith.constant 0 : i32
    return %c0_i32, %c0_i32_0 : i32, i32
  }
  func.func @transform_3(%arg0: i32) -> (i32, i32) {
    %c0_i32 = arith.constant 0 : i32
    %c0_i32_0 = arith.constant 0 : i32
    %c0_i32_1 = arith.constant 0 : i32
    return %c0_i32, %c0_i32_0 : i32, i32
  }
  func.func @transform_4(%arg0: i32) -> (i32, i32) {
    %c0_i32 = arith.constant 0 : i32
    %c0_i32_0 = arith.constant 0 : i32
    %c0_i32_1 = arith.constant 0 : i32
    return %c0_i32, %c0_i32_0 : i32, i32
  }
  func.func @transform_5(%arg0: i32) -> (i32, i32) {
    %c0_i32 = arith.constant 0 : i32
    %c0_i32_0 = arith.constant 0 : i32
    return %arg0, %c0_i32 : i32, i32
  }
}

</mosaic_0001>

<llo_original>
// kernel: mlp_q_net_forward.1
$region0: #{mlp_q_net_forward.1}
  #allocation0 [shape = 'u32[]', space=smem, size = 0x4, offset = 0x4, fixed_abs, tag = 'smem constant byte address 0x4 - core index']
  #allocation1 [shape = 'u32[144,128]{1,0:T(1,128)}', space=vmem, size = 0x12000, scoped, tag = 'internal scratch']
  %s0 = inlined_call_operand.vmem [shape: bf16[16,16], index: 0, kind: input, shape index: {}]
  %s1 = inlined_call_operand.vmem [shape: bf16[16,128], index: 1, kind: input, shape index: {}]
  %s2 = inlined_call_operand.vmem [shape: f32[1,128], index: 2, kind: input, shape index: {}]
  %s3 = inlined_call_operand.hbm [shape: bf16[128,128], index: 3, kind: input, shape index: {}]
  %s4 = inlined_call_operand.vmem [shape: f32[1,128], index: 4, kind: input, shape index: {}]
  %s5 = inlined_call_operand.vmem [shape: f32[16,4], index: 5, kind: output, shape index: {}]
  %s6 = sld [smem:[#allocation0]]
  $region34: #{mlp_q_net_forward.1} parent=0
    _
  %s8 = ssub.s32 1, %s6
  %s9 = scalar_select 0, %s8, %s6
  $region1: #{mlp_q_net_forward.1} parent=0
    #allocation2 [shape = 'u8[32768]{0}', space=vmem, size = 0x8000, scoped, tag = 'input window, operand 3, single buffered']
    #allocation3 [shape = 's32[1]{0}', space=sflag, size = 0x4, scoped, tag = 'scoped memory for mlp_q_net_forward.1']
    %10 = vsyncpa [#allocation3], 0
    // Predicated region
    $region2: #{mlp_q_net_forward.1} parent=1 // pred_check
      _
    $region3: #{mlp_q_net_forward.1} parent=1 // pred_check_branch
      %12 = sbr.rel (0) target = $region5
    $region4: #{mlp_q_net_forward.1} parent=1 // pred_region
      _
    $region5: #{mlp_q_net_forward.1} parent=1 // pred_fallthru
      _
    // Predicated region
    $region6: #{mlp_q_net_forward.1} parent=1 // pred_check
      _
    $region7: #{mlp_q_net_forward.1} parent=1 // pred_check_branch
      %14 = sbr.rel (0) target = $region9
    $region8: #{mlp_q_net_forward.1} parent=1 // pred_region
      _
    $region9: #{mlp_q_net_forward.1} parent=1 // pred_fallthru
      _
    // Predicated region
    $region10: #{mlp_q_net_forward.1} parent=1 // pred_check
      _
    $region11: #{mlp_q_net_forward.1} parent=1 // pred_check_branch
      %16 = sbr.rel (0) target = $region13
    $region12: #{mlp_q_net_forward.1} parent=1 // pred_region
      _
    $region13: #{mlp_q_net_forward.1} parent=1 // pred_fallthru
      _
    // Predicated region
    $region14: #{mlp_q_net_forward.1} parent=1 // pred_check
      _
    $region15: #{mlp_q_net_forward.1} parent=1 // pred_check_branch
      %18 = sbr.rel (0) target = $region17
    $region16: #{mlp_q_net_forward.1} parent=1 // pred_region
      %s20 = ssub.s32 1024, 1024
      %21 = vsyncadd [#allocation3], %s20
      %s22 = sshll.u32 [#allocation2], 4
      %s23 = int_to_ptr.vmem [resolvable:$true] %s22
      %28 = dma.hbm_to_vmem [thread:$0]  %s3, 1024, %s23, [#allocation3], 64, 64, 4
    $region17: #{mlp_q_net_forward.1} parent=1 // pred_fallthru
      _
    // Predicated region
    $region18: #{mlp_q_net_forward.1} parent=1 // pred_check
      _
    $region19: #{mlp_q_net_forward.1} parent=1 // pred_check_branch
      %30 = sbr.rel (0) target = $region21
    $region20: #{mlp_q_net_forward.1} parent=1 // pred_region
      _
    $region21: #{mlp_q_net_forward.1} parent=1 // pred_fallthru
      _
    // Predicated region
    $region22: #{mlp_q_net_forward.1} parent=1 // pred_check
      _
    $region23: #{mlp_q_net_forward.1} parent=1 // pred_check_branch
      %32 = sbr.rel (0) target = $region25
    $region24: #{mlp_q_net_forward.1} parent=1 // pred_region
      %33 = dma.done [#allocation3], 1024
    $region25: #{mlp_q_net_forward.1} parent=1 // pred_fallthru
      _
    %v35 = vld [vmem:[%s0] sm:$0xf]
    %v36 = vld [vmem:[%s0 + $0x4] sm:$0xf]
    %v37 = vld [vmem:[%s1] sm:$0xf]
    %v38 = vld [vmem:[%s1 + $0x4] sm:$0xf]
    %v39 = vld [vmem:[%s2] sm:$0x1]
    %v41 = vlaneseq
    %v42 = vshrl.u32 %v41, 7
    %v43 = vsub.s32 0, %v42
    %v44 = vrot.slane %v39, %v43
    %v48 = vunpack.c.l.b16 %v35
    %v49 = vunpack.c.l.b16 %v36
    %v50 = vpack.c.b16 %v49, %v48
    %v53 = vunpack.c.l.b16 %v37
    %v54 = vunpack.c.l.b16 %v38
    %v55 = vpack.c.b16 %v54, %v53
    %vm57 = vcmask 130048
    %v59 = vsel %vm57, %v50, 0
    %61 = vmatprep.subr.bf16.mxu0 0
    %62 = vmatpush1.bf16.msra.mxu0 %v55
    %63 = vmatprep.subr.bf16.mxu0 0
    %64 = vmatpush1.bf16.msra.mxu0 0
    %65 = vmatprep.subr.bf16.mxu0 0
    %66 = vmatpush1.bf16.msra.mxu0 0
    %67 = vmatprep.subr.bf16.mxu0 0
    %68 = vmatpush1.bf16.msra.mxu0 0
    %69 = vmatprep.subr.bf16.mxu0 0
    %70 = vmatpush1.bf16.msra.mxu0 0
    %71 = vmatprep.subr.bf16.mxu0 0
    %72 = vmatpush1.bf16.msra.mxu0 0
    %73 = vmatprep.subr.bf16.mxu0 0
    %74 = vmatpush1.bf16.msra.mxu0 0
    %75 = vmatprep.subr.bf16.mxu0 0
    %76 = vmatpush1.bf16.msra.mxu0 0
    %77 = vmatprep.subr.bf16.mxu0 0
    %78 = vmatpush1.bf16.msra.mxu0 0
    %79 = vmatprep.subr.bf16.mxu0 0
    %80 = vmatpush1.bf16.msra.mxu0 0
    %81 = vmatprep.subr.bf16.mxu0 0
    %82 = vmatpush1.bf16.msra.mxu0 0
    %83 = vmatprep.subr.bf16.mxu0 0
    %84 = vmatpush1.bf16.msra.mxu0 0
    %85 = vmatprep.subr.bf16.mxu0 0
    %86 = vmatpush1.bf16.msra.mxu0 0
    %87 = vmatprep.subr.bf16.mxu0 0
    %88 = vmatpush1.bf16.msra.mxu0 0
    %89 = vmatprep.subr.bf16.mxu0 0
    %90 = vmatpush1.bf16.msra.mxu0 0
    %91 = vmatprep.subr.bf16.mxu0 0
    %92 = vmatpush1.bf16.msra.mxu0 0
    %93 = vmatprep.mubr.bf16.mxu0 0
    %94 = vmatmul.mubr.bf16.gmra.mrb[0].mxu0 %v59
    %v95 = vpop.f32.mrb[0].mxu0
    %v96 = vadd.f32 %v44, %v95
    %v97 = vpop.f32.mrb[0].mxu0
    %v98 = vpop.f32.mrb[0].mxu0
    %v99 = vadd.f32 %v44, %v98
    %v100 = vpop.f32.mrb[0].mxu0
    %101 = vdwg.mxu0
    %v102 = vmax.f32 %v96, 0.0
    %v103 = vmax.f32 %v99, 0.0
    %v104 = vpack.c.bf16 %v103, %v102
    %v105 = vld [vmem:[#allocation2] sm:$0xf]
    %v106 = vld [vmem:[#allocation2 + $0x4] sm:$0xf]
    %v107 = vld [vmem:[#allocation2 + $0x8] sm:$0xf]
    %v108 = vld [vmem:[#allocation2 + $0xc] sm:$0xf]
    %v109 = vld [vmem:[#allocation2 + $0x10] sm:$0xf]
    %v110 = vld [vmem:[#allocation2 + $0x14] sm:$0xf]
    %v111 = vld [vmem:[#allocation2 + $0x18] sm:$0xf]
    %v112 = vld [vmem:[#allocation2 + $0x1c] sm:$0xf]
    %v113 = vld [vmem:[#allocation2 + $0x20] sm:$0xf]
    %v114 = vld [vmem:[#allocation2 + $0x24] sm:$0xf]
    %v115 = vld [vmem:[#allocation2 + $0x28] sm:$0xf]
    %v116 = vld [vmem:[#allocation2 + $0x2c] sm:$0xf]
    %v117 = vld [vmem:[#allocation2 + $0x30] sm:$0xf]
    %v118 = vld [vmem:[#allocation2 + $0x34] sm:$0xf]
    %v119 = vld [vmem:[#allocation2 + $0x38] sm:$0xf]
    %v120 = vld [vmem:[#allocation2 + $0x3c] sm:$0xf]
    %v121 = vld [vmem:[%s4] sm:$0x1]
    %v123 = vlaneseq
    %v124 = vshrl.u32 %v123, 7
    %v125 = vsub.s32 0, %v124
    %v126 = vrot.slane %v121, %v125
    %v144 = vunpack.c.l.b16 %v105
    %v145 = vunpack.c.l.b16 %v106
    %v146 = vunpack.c.l.b16 %v107
    %v147 = vunpack.c.l.b16 %v108
    %v148 = vunpack.c.l.b16 %v109
    %v149 = vunpack.c.l.b16 %v110
    %v150 = vunpack.c.l.b16 %v111
    %v151 = vunpack.c.l.b16 %v112
    %v152 = vunpack.c.l.b16 %v113
    %v153 = vunpack.c.l.b16 %v114
    %v154 = vunpack.c.l.b16 %v115
    %v155 = vunpack.c.l.b16 %v116
    %v156 = vunpack.c.l.b16 %v117
    %v157 = vunpack.c.l.b16 %v118
    %v158 = vunpack.c.l.b16 %v119
    %v159 = vunpack.c.l.b16 %v120
    %v160 = vpack.c.b16 %v145, %v144
    %v161 = vpack.c.b16 %v147, %v146
    %v162 = vpack.c.b16 %v149, %v148
    %v163 = vpack.c.b16 %v151, %v150
    %v164 = vpack.c.b16 %v153, %v152
    %v165 = vpack.c.b16 %v155, %v154
    %v166 = vpack.c.b16 %v157, %v156
    %v167 = vpack.c.b16 %v159, %v158
    %176 = vmatprep.subr.bf16.mxu0 0
    %177 = vmatpush1.bf16.msra.mxu0 %v160
    %178 = vmatprep.subr.bf16.mxu0 0
    %179 = vmatpush1.bf16.msra.mxu0 %v161
    %180 = vmatprep.subr.bf16.mxu0 0
    %181 = vmatpush1.bf16.msra.mxu0 %v162
    %182 = vmatprep.subr.bf16.mxu0 0
    %183 = vmatpush1.bf16.msra.mxu0 %v163
    %184 = vmatprep.subr.bf16.mxu0 0
    %185 = vmatpush1.bf16.msra.mxu0 %v164
    %186 = vmatprep.subr.bf16.mxu0 0
    %187 = vmatpush1.bf16.msra.mxu0 %v165
    %188 = vmatprep.subr.bf16.mxu0 0
    %189 = vmatpush1.bf16.msra.mxu0 %v166
    %190 = vmatprep.subr.bf16.mxu0 0
    %191 = vmatpush1.bf16.msra.mxu0 %v167
    %192 = vmatprep.subr.bf16.mxu0 0
    %193 = vmatpush1.bf16.msra.mxu0 0
    %194 = vmatprep.subr.bf16.mxu0 0
    %195 = vmatpush1.bf16.msra.mxu0 0
    %196 = vmatprep.subr.bf16.mxu0 0
    %197 = vmatpush1.bf16.msra.mxu0 0
    %198 = vmatprep.subr.bf16.mxu0 0
    %199 = vmatpush1.bf16.msra.mxu0 0
    %200 = vmatprep.subr.bf16.mxu0 0
    %201 = vmatpush1.bf16.msra.mxu0 0
    %202 = vmatprep.subr.bf16.mxu0 0
    %203 = vmatpush1.bf16.msra.mxu0 0
    %204 = vmatprep.subr.bf16.mxu0 0
    %205 = vmatpush1.bf16.msra.mxu0 0
    %206 = vmatprep.subr.bf16.mxu0 0
    %207 = vmatpush1.bf16.msra.mxu0 0
    %208 = vmatprep.mubr.bf16.mxu0 0
    %209 = vmatmul.mubr.bf16.gmra.mrb[0].mxu0 %v104
    %v210 = vpop.f32.mrb[0].mxu0
    %v211 = vadd.f32 %v126, %v210
    %v212 = vpop.f32.mrb[0].mxu0
    %v213 = vpop.f32.mrb[0].mxu0
    %v214 = vadd.f32 %v126, %v213
    %v215 = vpop.f32.mrb[0].mxu0
    %216 = vdwg.mxu0
    %vm217 = vcmask 31744
    %218 = vst.msk [vmem:[%s5] sm:$0xff] %vm217, %v211
    %219 = vst.msk [vmem:[%s5 + $0x8] sm:$0xff] %vm217, %v214
    // Predicated region
    $region26: #{mlp_q_net_forward.1} parent=1 // pred_check
      _
    $region27: #{mlp_q_net_forward.1} parent=1 // pred_check_branch
      %221 = sbr.rel (0) target = $region29
    $region28: #{mlp_q_net_forward.1} parent=1 // pred_region
      _
    $region29: #{mlp_q_net_forward.1} parent=1 // pred_fallthru
      _
    // Predicated region
    $region30: #{mlp_q_net_forward.1} parent=1 // pred_check
      _
    $region31: #{mlp_q_net_forward.1} parent=1 // pred_check_branch
      %223 = sbr.rel (0) target = $region33
    $region32: #{mlp_q_net_forward.1} parent=1 // pred_region
      _
    $region33: #{mlp_q_net_forward.1} parent=1 // pred_fallthru
      _
    %224 = vsyncpa [#allocation3], 1

</llo_original>
